<compile_context>
chip_gen: v5e
topology: v5e:2x2
jax: 0.10.0
libtpu: 0.0.40
codegen_flags: <defaults>
</compile_context>

<pallas_src>
import functools

import jax
import jax.numpy as jnp
from jax.experimental import pallas as pl
from jax.experimental.pallas import tpu as pltpu


def _round_up(x, m):
    return (x + m - 1) // m * m


def _largest_divisor(n, cap):
    best = 1
    for k in range(1, min(n, cap) + 1):
        if n % k == 0:
            best = k
    return best


# ----------------------------------------------------------------------------
# Bidirectional LSTM recurrence kernel.
#
# grid = (num_dir, num_time_chunks):
#   axis 0 ("parallel")  : direction (0 = left->right, 1 = right->left)
#   axis 1 ("arbitrary") : time chunks, walked in direction-dependent order by
#                          the index maps; h/c carries live in VMEM scratch.
# ----------------------------------------------------------------------------
def _bilstm_kernel(x_ref, wih_ref, whh_ref, b_ref, out_ref, h_s, c_s, gx_s):
    d = pl.program_id(0)                    # direction
    c = pl.program_id(1)                    # chunk counter (direction-ordered)
    B, Hp = h_s.shape
    Tc = x_ref.shape[0] // B                # time steps in this chunk

    @pl.when(c == 0)
    def _():
        h_s[...] = jnp.zeros_like(h_s)
        c_s[...] = jnp.zeros_like(c_s)

    # Fused input projection + bias for the whole chunk: one big MXU pass,
    # (chunk*B, E) @ (E, 4*Hp), bf16 inputs with f32 accumulation.
    gx_s[...] = (
        jnp.dot(x_ref[...], wih_ref[...], preferred_element_type=jnp.float32)
        + b_ref[...])

    whh = whh_ref[...]                      # (Hp, 4*Hp) bf16

    def step(t, carry):
        h, cc = carry
        # forward walks ascending, backward descending within the chunk.
        idx = jnp.where(d == 0, t, Tc - 1 - t)
        row0 = pl.multiple_of(idx * B, B)
        gates = gx_s[pl.ds(row0, B), :] + jnp.dot(
            h.astype(whh.dtype), whh, preferred_element_type=jnp.float32)
        i = jax.nn.sigmoid(gates[:, 0 * Hp:1 * Hp])
        f = jax.nn.sigmoid(gates[:, 1 * Hp:2 * Hp])
        g = jnp.tanh(gates[:, 2 * Hp:3 * Hp])
        o = jax.nn.sigmoid(gates[:, 3 * Hp:4 * Hp])
        cc = f * cc + i * g
        h = o * jnp.tanh(cc)
        out_ref[pl.ds(row0, B), :] = h
        return h, cc

    h_new, c_new = jax.lax.fori_loop(0, Tc, step, (h_s[...], c_s[...]))
    h_s[...] = h_new
    c_s[...] = c_new


def run_bilstm(x_flat, wih, whh, b, *, seq_len, batch, max_chunk=128):
    """x_flat: (S*B, E) bf16, time-major rows.  wih: (num_dir, E, 4*Hp) bf16,
    whh: (num_dir, Hp, 4*Hp) bf16, b: (num_dir, 1, 4*Hp) f32.

    Returns hidden states (num_dir, S*B, Hp) f32, aligned with the original
    positions for both directions (the backward pass walks right-to-left and
    writes its outputs back at the original time positions)."""
    rows_total, E = x_flat.shape
    num_dir, _, G = wih.shape
    Hp = G // 4

    chunk = _largest_divisor(seq_len, max_chunk)
    if (chunk * batch) % 8 != 0:
        chunk = seq_len                     # full-extent block is always legal
    num_chunks = seq_len // chunk
    rows = chunk * batch

    def data_idx(d, c):
        # fwd consumes chunks left->right, bwd right->left.
        return (c * (1 - d) + (num_chunks - 1 - c) * d, 0)

    def out_idx(d, c):
        return (d, c * (1 - d) + (num_chunks - 1 - c) * d, 0)

    return pl.pallas_call(
        _bilstm_kernel,
        out_shape=jax.ShapeDtypeStruct((num_dir, rows_total, Hp), jnp.float32),
        grid_spec=pltpu.PrefetchScalarGridSpec(
            num_scalar_prefetch=0,
            grid=(num_dir, num_chunks),
            in_specs=[
                pl.BlockSpec((rows, E), data_idx),
                pl.BlockSpec((None, E, G), lambda d, c: (d, 0, 0)),
                pl.BlockSpec((None, Hp, G), lambda d, c: (d, 0, 0)),
                pl.BlockSpec((None, 1, G), lambda d, c: (d, 0, 0)),
            ],
            out_specs=pl.BlockSpec((None, rows, Hp), out_idx),
            scratch_shapes=[
                pltpu.VMEM((batch, Hp), jnp.float32),    # h carry
                pltpu.VMEM((batch, Hp), jnp.float32),    # c carry
                pltpu.VMEM((rows, G), jnp.float32),      # chunk input gates
            ],
        ),
        compiler_params=pltpu.CompilerParams(
            dimension_semantics=("parallel", "arbitrary")),
    )(x_flat, wih, whh, b)


# ----------------------------------------------------------------------------
# hidden2tag + argmax + mask kernel, tiled over the flattened token axis.
# ----------------------------------------------------------------------------
def _tag_kernel(h_ref, w_ref, b_ref, mask_ref, out_ref):
    num_dir = h_ref.shape[0]
    scores = jnp.dot(h_ref[0], w_ref[0], preferred_element_type=jnp.float32)
    for k in range(1, num_dir):
        scores = scores + jnp.dot(h_ref[k], w_ref[k],
                                  preferred_element_type=jnp.float32)
    scores = scores + b_ref[...]                       # (rows, Lp)
    num_lp = scores.shape[-1]
    m = jnp.max(scores, axis=-1, keepdims=True)
    lane = jax.lax.broadcasted_iota(jnp.int32, scores.shape, 1)
    cand = jnp.where(scores == m, lane, num_lp)        # first-max tie-break
    tag = jnp.min(cand, axis=-1, keepdims=True)        # (rows, 1) int32
    out_ref[...] = mask_ref[...] * tag


def run_tag_head(hidden, w_tag_p, b_tag_p, mask_flat, *, max_rows=512):
    """hidden: (num_dir, N, Hp) f32; w_tag_p: (num_dir, Hp, Lp) f32;
    b_tag_p: (1, Lp) f32 (padded labels carry -1e30); mask_flat: (N, 1) int32.
    Returns masked tag ids (N, 1) int32 in time-major row order."""
    num_dir, N, Hp = hidden.shape
    Lp = w_tag_p.shape[-1]
    rows = _largest_divisor(N, max_rows)
    if rows % 8 != 0:
        rows = N
    return pl.pallas_call(
        _tag_kernel,
        out_shape=jax.ShapeDtypeStruct((N, 1), jnp.int32),
        grid_spec=pltpu.PrefetchScalarGridSpec(
            num_scalar_prefetch=0,
            grid=(N // rows,),
            in_specs=[
                pl.BlockSpec((num_dir, rows, Hp), lambda n: (0, n, 0)),
                pl.BlockSpec((num_dir, Hp, Lp), lambda n: (0, 0, 0)),
                pl.BlockSpec((1, Lp), lambda n: (0, 0)),
                pl.BlockSpec((rows, 1), lambda n: (n, 0)),
            ],
            out_specs=pl.BlockSpec((rows, 1), lambda n: (n, 0)),
        ),
        compiler_params=pltpu.CompilerParams(
            dimension_semantics=("parallel",)),
    )(hidden, w_tag_p, b_tag_p, mask_flat)


# ----------------------------------------------------------------------------
# BiLSTM module (parameters + forward), deterministic init.
# ----------------------------------------------------------------------------
class BiLSTMPallas:
    def __init__(self, key, vocab_size, embsize, hidden_dim, num_labels,
                 use_bilstm=True):
        if use_bilstm:
            assert hidden_dim % 2 == 0
        self.vocab_size = vocab_size
        self.embsize = embsize
        self.hidden_dim = hidden_dim
        self.num_labels = num_labels
        self.use_bilstm = use_bilstm
        self.num_dir = 2 if use_bilstm else 1
        H = hidden_dim // 2 if use_bilstm else hidden_dim
        self.lstm_hidden = H
        Hp = _round_up(H, 32)             # -> 4*Hp is a multiple of 128 lanes
        Lp = _round_up(num_labels, 128)   # lane-dense tag-score tile
        self.Hp, self.Lp = Hp, Lp

        ks = jax.random.split(key, 8)
        scale_e = (3.0 / embsize) ** 0.5
        self.embedding = jax.random.uniform(
            ks[0], (vocab_size, embsize), jnp.float32, -scale_e, scale_e)

        def lstm_params(k):
            # Per-gate weights in (i, f, g, o) order, packed into a fused,
            # gate-padded [i|f|g|o] layout of width 4*Hp (padded gate columns
            # and padded hidden rows are zero -> padded hidden units stay 0).
            k1, k2, k3 = jax.random.split(k, 3)
            s = 1.0 / (H ** 0.5)
            wih = jax.random.uniform(k1, (4, embsize, H), jnp.float32, -s, s)
            whh = jax.random.uniform(k2, (4, H, H), jnp.float32, -s, s)
            bias = jax.random.uniform(k3, (4, H), jnp.float32, -s, s)
            wih_p = jnp.zeros((embsize, 4 * Hp), jnp.float32)
            whh_p = jnp.zeros((Hp, 4 * Hp), jnp.float32)
            b_p = jnp.zeros((1, 4 * Hp), jnp.float32)
            for g in range(4):
                wih_p = wih_p.at[:, g * Hp:g * Hp + H].set(wih[g])
                whh_p = whh_p.at[:H, g * Hp:g * Hp + H].set(whh[g])
                b_p = b_p.at[0, g * Hp:g * Hp + H].set(bias[g])
            return wih_p, whh_p, b_p

        params = [lstm_params(ks[1])]
        if use_bilstm:
            params.append(lstm_params(ks[2]))
        self.wih = jnp.stack([p[0] for p in params]).astype(jnp.bfloat16)
        self.whh = jnp.stack([p[1] for p in params]).astype(jnp.bfloat16)
        self.b_lstm = jnp.stack([p[2] for p in params])          # f32

        s = 1.0 / (hidden_dim ** 0.5)
        w_tag = jax.random.uniform(ks[3], (hidden_dim, num_labels),
                                   jnp.float32, -s, s)
        b_tag = jax.random.uniform(ks[4], (num_labels,), jnp.float32, -s, s)
        w_tag_p = jnp.zeros((self.num_dir, Hp, Lp), jnp.float32)
        for d in range(self.num_dir):
            w_tag_p = w_tag_p.at[d, :H, :num_labels].set(
                w_tag[d * H:(d + 1) * H])
        self.w_tag_p = w_tag_p
        # Padded label columns get a very negative bias -> never win argmax.
        self.b_tag_p = jnp.full((1, Lp), -1e30, jnp.float32
                                ).at[0, :num_labels].set(b_tag)

    @functools.partial(jax.jit, static_argnums=0)
    def forward(self, input_ids, input_mask, component_ids, component_len):
        # char_embs are computed but unused downstream (matches the reference).
        _ = self.embedding[input_ids]
        B, S = component_ids.shape
        # Gather embeddings directly in time-major order (no separate HBM
        # transpose of the embedded activations); dropout = identity in eval.
        x = self.embedding[component_ids.T].reshape(S * B, self.embsize)
        x = x.astype(jnp.bfloat16)

        hidden = run_bilstm(x, self.wih, self.whh, self.b_lstm,
                            seq_len=S, batch=B)          # (num_dir, S*B, Hp)

        mask_flat = input_mask.astype(jnp.int32).T.reshape(S * B, 1)
        tags = run_tag_head(hidden, self.w_tag_p, self.b_tag_p, mask_flat)
        return tags.reshape(S, B).T                      # (B, S) int32


if __name__ == "__main__":
    key = jax.random.PRNGKey(0)
    k_model, k_ids, k_comp, k_len = jax.random.split(key, 4)

    batch, seq = 2, 8
    vocab_size, embsize, hidden_dim, num_labels = 100, 32, 32, 8

    model = BiLSTMPallas(k_model, vocab_size, embsize, hidden_dim, num_labels,
                         use_bilstm=True)

    input_ids = jax.random.randint(k_ids, (batch, seq), 1, vocab_size,
                                   dtype=jnp.int32)
    component_ids = jax.random.randint(k_comp, (batch, seq), 1, vocab_size,
                                       dtype=jnp.int32)
    component_len = jax.random.randint(k_len, (batch, seq), 0, 3,
                                       dtype=jnp.int32)
    # deterministic mask: first sequence fully valid, second has 2 pad slots
    lengths = jnp.array([seq, seq - 2], dtype=jnp.int32)
    input_mask = (jnp.arange(seq)[None, :] < lengths[:, None]).astype(jnp.int32)

    decode_seq = model.forward(input_ids, input_mask, component_ids,
                               component_len)
    decode_seq = jax.block_until_ready(decode_seq)
    assert decode_seq.shape == (batch, seq)
    assert decode_seq.dtype == jnp.int32
    print("KERNEL_OK")
</pallas_src>

<mosaic_0001>
module attributes {stable_mosaic.version = 11 : i64} {
  func.func @_bilstm_kernel(%arg0: i32, %arg1: i32, %arg2: memref<16x32xbf16, #tpu.memory_space<vmem>>, %arg3: memref<1x32x128xbf16, #tpu.memory_space<vmem>>, %arg4: memref<1x32x128xbf16, #tpu.memory_space<vmem>>, %arg5: memref<1x1x128xf32, #tpu.memory_space<vmem>>, %arg6: memref<1x16x32xf32, #tpu.memory_space<vmem>>, %arg7: memref<2x32xf32, #tpu.memory_space<vmem>>, %arg8: memref<2x32xf32, #tpu.memory_space<vmem>>, %arg9: memref<16x128xf32, #tpu.memory_space<vmem>>) attributes {dimension_semantics = [#tpu.dimension_semantics<parallel>, #tpu.dimension_semantics<arbitrary>], iteration_bounds = array<i64: 2, 1>, scalar_prefetch = 0 : i64, scratch_operands = 3 : i64, tpu.core_type = #tpu.core_type<tc>, window_params = [{transform_indices = @transform_0, window_bounds = array<i64: 16, 32>}, {transform_indices = @transform_1, window_bounds = array<i64: 1, 32, 128>}, {transform_indices = @transform_2, window_bounds = array<i64: 1, 32, 128>}, {transform_indices = @transform_3, window_bounds = array<i64: 1, 1, 128>}, {transform_indices = @transform_4, window_bounds = array<i64: 1, 16, 32>}]} {
    %c0_i32 = arith.constant 0 : i32
    %0 = arith.cmpi eq, %arg1, %c0_i32 : i32
    %1 = arith.extui %0 : i1 to i32
    %c0_i32_0 = arith.constant 0 : i32
    %2 = arith.cmpi ne, %1, %c0_i32_0 : i32
    scf.if %2 {
      %cst_23 = arith.constant 0.000000e+00 : f32
      %20 = vector.broadcast %cst_23 : f32 to vector<2x32xf32>
      %c0_24 = arith.constant 0 : index
      %c0_25 = arith.constant 0 : index
      %21 = vector.load %arg7[%c0_24, %c0_25] : memref<2x32xf32, #tpu.memory_space<vmem>>, vector<2x32xf32>
      tpu.vector_store %arg7[%c0_24, %c0_25], %20 {strides = array<i32>} : memref<2x32xf32, #tpu.memory_space<vmem>>, vector<2x32xf32>,
      %cst_26 = arith.constant 0.000000e+00 : f32
      %22 = vector.broadcast %cst_26 : f32 to vector<2x32xf32>
      %c0_27 = arith.constant 0 : index
      %c0_28 = arith.constant 0 : index
      %23 = vector.load %arg8[%c0_27, %c0_28] : memref<2x32xf32, #tpu.memory_space<vmem>>, vector<2x32xf32>
      tpu.vector_store %arg8[%c0_27, %c0_28], %22 {strides = array<i32>} : memref<2x32xf32, #tpu.memory_space<vmem>>, vector<2x32xf32>,
    } else {
    }
    %c0 = arith.constant 0 : index
    %c0_1 = arith.constant 0 : index
    %3 = vector.load %arg2[%c0, %c0_1] : memref<16x32xbf16, #tpu.memory_space<vmem>>, vector<16x32xbf16>
    %c0_2 = arith.constant 0 : index
    %c0_3 = arith.constant 0 : index
    %c0_4 = arith.constant 0 : index
    %4 = vector.load %arg3[%c0_2, %c0_3, %c0_4] : memref<1x32x128xbf16, #tpu.memory_space<vmem>>, vector<1x32x128xbf16>
    %5 = vector.shape_cast %4 : vector<1x32x128xbf16> to vector<32x128xbf16>
    %cst = arith.constant dense<0.000000e+00> : vector<16x128xf32>
    %6 = tpu.matmul %3, %5, %cst {dimension_numbers = #tpu.dot_dimension_numbers<[1], [0], [0], [1], [0, 0, 1, 1], [], []>} : vector<16x32xbf16>, vector<32x128xbf16>, vector<16x128xf32> -> vector<16x128xf32>
    %c0_5 = arith.constant 0 : index
    %c0_6 = arith.constant 0 : index
    %c0_7 = arith.constant 0 : index
    %7 = vector.load %arg5[%c0_5, %c0_6, %c0_7] : memref<1x1x128xf32, #tpu.memory_space<vmem>>, vector<1x1x128xf32>
    %8 = vector.shape_cast %7 : vector<1x1x128xf32> to vector<1x128xf32>
    %9 = vector.broadcast %8 : vector<1x128xf32> to vector<16x128xf32>
    %10 = arith.addf %6, %9 : vector<16x128xf32>
    %c0_8 = arith.constant 0 : index
    %c0_9 = arith.constant 0 : index
    %11 = vector.load %arg9[%c0_8, %c0_9] : memref<16x128xf32, #tpu.memory_space<vmem>>, vector<16x128xf32>
    tpu.vector_store %arg9[%c0_8, %c0_9], %10 {strides = array<i32>} : memref<16x128xf32, #tpu.memory_space<vmem>>, vector<16x128xf32>,
    %c0_10 = arith.constant 0 : index
    %c0_11 = arith.constant 0 : index
    %c0_12 = arith.constant 0 : index
    %12 = vector.load %arg4[%c0_10, %c0_11, %c0_12] : memref<1x32x128xbf16, #tpu.memory_space<vmem>>, vector<1x32x128xbf16>
    %13 = vector.shape_cast %12 : vector<1x32x128xbf16> to vector<32x128xbf16>
    %c0_13 = arith.constant 0 : index
    %c0_14 = arith.constant 0 : index
    %14 = vector.load %arg7[%c0_13, %c0_14] : memref<2x32xf32, #tpu.memory_space<vmem>>, vector<2x32xf32>
    %c0_15 = arith.constant 0 : index
    %c0_16 = arith.constant 0 : index
    %15 = vector.load %arg8[%c0_15, %c0_16] : memref<2x32xf32, #tpu.memory_space<vmem>>, vector<2x32xf32>
    %c0_i32_17 = arith.constant 0 : i32
    %c8_i32 = arith.constant 8 : i32
    %16 = arith.addi %c0_i32_17, %c8_i32 : i32
    %c1_i32 = arith.constant 1 : i32
    %17:2 = scf.for %arg10 = %c0_i32_17 to %16 step %c1_i32 iter_args(%arg11 = %14, %arg12 = %15) -> (vector<2x32xf32>, vector<2x32xf32>)  : i32 {
      %c0_i32_23 = arith.constant 0 : i32
      %20 = arith.cmpi eq, %arg0, %c0_i32_23 : i32
      %c7_i32 = arith.constant 7 : i32
      %21 = arith.subi %c7_i32, %arg10 : i32
      %22 = arith.select %20, %arg10, %21 : i32
      %c2_i32 = arith.constant 2 : i32
      %23 = arith.muli %22, %c2_i32 : i32
      %24 = tpu.assume_multiple %23, 2 : i32
      %25 = arith.index_cast %24 : i32 to index
      %c0_24 = arith.constant 0 : index
      %26 = vector.load %arg9[%25, %c0_24] : memref<16x128xf32, #tpu.memory_space<vmem>>, vector<2x128xf32>
      %27 = arith.truncf %arg11 : vector<2x32xf32> to vector<2x32xbf16>
      %cst_25 = arith.constant dense<0.000000e+00> : vector<2x128xf32>
      %28 = tpu.matmul %27, %13, %cst_25 {dimension_numbers = #tpu.dot_dimension_numbers<[1], [0], [0], [1], [0, 0, 1, 1], [], []>} : vector<2x32xbf16>, vector<32x128xbf16>, vector<2x128xf32> -> vector<2x128xf32>
      %29 = arith.addf %26, %28 : vector<2x128xf32>
      %30 = vector.extract_strided_slice %29 {offsets = [0, 0], sizes = [2, 32], strides = [1, 1]} : vector<2x128xf32> to vector<2x32xf32>
      %31 = arith.negf %30 : vector<2x32xf32>
      %32 = math.exp %31 : vector<2x32xf32>
      %cst_26 = arith.constant 1.000000e+00 : f32
      %33 = vector.broadcast %cst_26 : f32 to vector<2x32xf32>
      %34 = arith.addf %33, %32 : vector<2x32xf32>
      %35 = arith.divf %33, %34 : vector<2x32xf32>
      %36 = vector.extract_strided_slice %29 {offsets = [0, 32], sizes = [2, 32], strides = [1, 1]} : vector<2x128xf32> to vector<2x32xf32>
      %37 = arith.negf %36 : vector<2x32xf32>
      %38 = math.exp %37 : vector<2x32xf32>
      %cst_27 = arith.constant 1.000000e+00 : f32
      %39 = vector.broadcast %cst_27 : f32 to vector<2x32xf32>
      %40 = arith.addf %39, %38 : vector<2x32xf32>
      %41 = arith.divf %39, %40 : vector<2x32xf32>
      %42 = vector.extract_strided_slice %29 {offsets = [0, 64], sizes = [2, 32], strides = [1, 1]} : vector<2x128xf32> to vector<2x32xf32>
      %43 = math.tanh %42 : vector<2x32xf32>
      %44 = vector.extract_strided_slice %29 {offsets = [0, 96], sizes = [2, 32], strides = [1, 1]} : vector<2x128xf32> to vector<2x32xf32>
      %45 = arith.negf %44 : vector<2x32xf32>
      %46 = math.exp %45 : vector<2x32xf32>
      %cst_28 = arith.constant 1.000000e+00 : f32
      %47 = vector.broadcast %cst_28 : f32 to vector<2x32xf32>
      %48 = arith.addf %47, %46 : vector<2x32xf32>
      %49 = arith.divf %47, %48 : vector<2x32xf32>
      %50 = arith.mulf %41, %arg12 : vector<2x32xf32>
      %51 = arith.mulf %35, %43 : vector<2x32xf32>
      %52 = arith.addf %50, %51 : vector<2x32xf32>
      %53 = math.tanh %52 : vector<2x32xf32>
      %54 = arith.mulf %49, %53 : vector<2x32xf32>
      %c0_29 = arith.constant 0 : index
      %55 = arith.index_cast %24 : i32 to index
      %c0_30 = arith.constant 0 : index
      %56 = vector.load %arg6[%c0_29, %55, %c0_30] : memref<1x16x32xf32, #tpu.memory_space<vmem>>, vector<1x2x32xf32>
      %57 = vector.shape_cast %56 : vector<1x2x32xf32> to vector<2x32xf32>
      %58 = vector.shape_cast %54 : vector<2x32xf32> to vector<1x2x32xf32>
      tpu.vector_store %arg6[%c0_29, %55, %c0_30], %58 {strides = array<i32>} : memref<1x16x32xf32, #tpu.memory_space<vmem>>, vector<1x2x32xf32>,
      scf.yield %54, %52 : vector<2x32xf32>, vector<2x32xf32>
    }
    %c8_i32_18 = arith.constant 8 : i32
    %c0_19 = arith.constant 0 : index
    %c0_20 = arith.constant 0 : index
    %18 = vector.load %arg7[%c0_19, %c0_20] : memref<2x32xf32, #tpu.memory_space<vmem>>, vector<2x32xf32>
    tpu.vector_store %arg7[%c0_19, %c0_20], %17#0 {strides = array<i32>} : memref<2x32xf32, #tpu.memory_space<vmem>>, vector<2x32xf32>,
    %c0_21 = arith.constant 0 : index
    %c0_22 = arith.constant 0 : index
    %19 = vector.load %arg8[%c0_21, %c0_22] : memref<2x32xf32, #tpu.memory_space<vmem>>, vector<2x32xf32>
    tpu.vector_store %arg8[%c0_21, %c0_22], %17#1 {strides = array<i32>} : memref<2x32xf32, #tpu.memory_space<vmem>>, vector<2x32xf32>,
    return
  }
  func.func @transform_0(%arg0: i32, %arg1: i32) -> (i32, i32) {
    %c1_i32 = arith.constant 1 : i32
    %0 = arith.subi %c1_i32, %arg0 : i32
    %1 = arith.muli %arg1, %0 : i32
    %c0_i32 = arith.constant 0 : i32
    %2 = arith.subi %c0_i32, %arg1 : i32
    %3 = arith.muli %2, %arg0 : i32
    %4 = arith.addi %1, %3 : i32
    %c0_i32_0 = arith.constant 0 : i32
    %c0_i32_1 = arith.constant 0 : i32
    return %4, %c0_i32_0 : i32, i32
  }
  func.func @transform_1(%arg0: i32, %arg1: i32) -> (i32, i32, i32) {
    %c0_i32 = arith.constant 0 : i32
    %c0_i32_0 = arith.constant 0 : i32
    %c0_i32_1 = arith.constant 0 : i32
    return %arg0, %c0_i32, %c0_i32_0 : i32, i32, i32
  }
  func.func @transform_2(%arg0: i32, %arg1: i32) -> (i32, i32, i32) {
    %c0_i32 = arith.constant 0 : i32
    %c0_i32_0 = arith.constant 0 : i32
    %c0_i32_1 = arith.constant 0 : i32
    return %arg0, %c0_i32, %c0_i32_0 : i32, i32, i32
  }
  func.func @transform_3(%arg0: i32, %arg1: i32) -> (i32, i32, i32) {
    %c0_i32 = arith.constant 0 : i32
    %c0_i32_0 = arith.constant 0 : i32
    %c0_i32_1 = arith.constant 0 : i32
    return %arg0, %c0_i32, %c0_i32_0 : i32, i32, i32
  }
  func.func @transform_4(%arg0: i32, %arg1: i32) -> (i32, i32, i32) {
    %c1_i32 = arith.constant 1 : i32
    %0 = arith.subi %c1_i32, %arg0 : i32
    %1 = arith.muli %arg1, %0 : i32
    %c0_i32 = arith.constant 0 : i32
    %2 = arith.subi %c0_i32, %arg1 : i32
    %3 = arith.muli %2, %arg0 : i32
    %4 = arith.addi %1, %3 : i32
    %c0_i32_0 = arith.constant 0 : i32
    %c0_i32_1 = arith.constant 0 : i32
    return %arg0, %4, %c0_i32_0 : i32, i32, i32
  }
}

module attributes {stable_mosaic.version = 11 : i64} {
  func.func @_tag_kernel(%arg0: i32, %arg1: memref<2x16x32xf32, #tpu.memory_space<vmem>>, %arg2: memref<2x32x128xf32, #tpu.memory_space<vmem>>, %arg3: memref<1x128xf32, #tpu.memory_space<vmem>>, %arg4: memref<16x1xi32, #tpu.memory_space<vmem>>, %arg5: memref<16x1xi32, #tpu.memory_space<vmem>>) attributes {dimension_semantics = [#tpu.dimension_semantics<parallel>], iteration_bounds = array<i64: 1>, scalar_prefetch = 0 : i64, scratch_operands = 0 : i64, tpu.core_type = #tpu.core_type<tc>, window_params = [{transform_indices = @transform_0, window_bounds = array<i64: 2, 16, 32>}, {pipeline_mode = #tpu.pipeline_mode<synchronous>, transform_indices = @transform_1, window_bounds = array<i64: 2, 32, 128>}, {pipeline_mode = #tpu.pipeline_mode<synchronous>, transform_indices = @transform_2, window_bounds = array<i64: 1, 128>}, {transform_indices = @transform_3, window_bounds = array<i64: 16, 1>}, {transform_indices = @transform_4, window_bounds = array<i64: 16, 1>}]} {
    %c0 = arith.constant 0 : index
    %c0_0 = arith.constant 0 : index
    %c0_1 = arith.constant 0 : index
    %0 = vector.load %arg1[%c0, %c0_0, %c0_1] : memref<2x16x32xf32, #tpu.memory_space<vmem>>, vector<1x16x32xf32>
    %1 = vector.shape_cast %0 : vector<1x16x32xf32> to vector<16x32xf32>
    %c0_2 = arith.constant 0 : index
    %c0_3 = arith.constant 0 : index
    %c0_4 = arith.constant 0 : index
    %2 = vector.load %arg2[%c0_2, %c0_3, %c0_4] : memref<2x32x128xf32, #tpu.memory_space<vmem>>, vector<1x32x128xf32>
    %3 = vector.shape_cast %2 : vector<1x32x128xf32> to vector<32x128xf32>
    %cst = arith.constant dense<0.000000e+00> : vector<16x128xf32>
    %4 = tpu.matmul %1, %3, %cst {dimension_numbers = #tpu.dot_dimension_numbers<[1], [0], [0], [1], [0, 0, 1, 1], [], []>} : vector<16x32xf32>, vector<32x128xf32>, vector<16x128xf32> -> vector<16x128xf32>
    %c1 = arith.constant 1 : index
    %c0_5 = arith.constant 0 : index
    %c0_6 = arith.constant 0 : index
    %5 = vector.load %arg1[%c1, %c0_5, %c0_6] : memref<2x16x32xf32, #tpu.memory_space<vmem>>, vector<1x16x32xf32>
    %6 = vector.shape_cast %5 : vector<1x16x32xf32> to vector<16x32xf32>
    %c1_7 = arith.constant 1 : index
    %c0_8 = arith.constant 0 : index
    %c0_9 = arith.constant 0 : index
    %7 = vector.load %arg2[%c1_7, %c0_8, %c0_9] : memref<2x32x128xf32, #tpu.memory_space<vmem>>, vector<1x32x128xf32>
    %8 = vector.shape_cast %7 : vector<1x32x128xf32> to vector<32x128xf32>
    %cst_10 = arith.constant dense<0.000000e+00> : vector<16x128xf32>
    %9 = tpu.matmul %6, %8, %cst_10 {dimension_numbers = #tpu.dot_dimension_numbers<[1], [0], [0], [1], [0, 0, 1, 1], [], []>} : vector<16x32xf32>, vector<32x128xf32>, vector<16x128xf32> -> vector<16x128xf32>
    %10 = arith.addf %4, %9 : vector<16x128xf32>
    %c0_11 = arith.constant 0 : index
    %c0_12 = arith.constant 0 : index
    %11 = vector.load %arg3[%c0_11, %c0_12] : memref<1x128xf32, #tpu.memory_space<vmem>>, vector<1x128xf32>
    %12 = vector.broadcast %11 : vector<1x128xf32> to vector<16x128xf32>
    %13 = arith.addf %10, %12 : vector<16x128xf32>
    %cst_13 = arith.constant dense<0xFF800000> : vector<16xf32>
    %14 = vector.multi_reduction <maximumf>, %13, %cst_13 [1] : vector<16x128xf32> to vector<16xf32>
    %15 = vector.shape_cast %14 : vector<16xf32> to vector<16x1xf32>
    %16 = tpu.iota {dimensions = array<i32: 1>} : vector<16x128xi32>
    %17 = vector.broadcast %15 : vector<16x1xf32> to vector<16x128xf32>
    %18 = arith.cmpf oeq, %13, %17 : vector<16x128xf32>
    %c128_i32 = arith.constant 128 : i32
    %19 = vector.broadcast %c128_i32 : i32 to vector<16x128xi32>
    %20 = arith.select %18, %16, %19 : vector<16x128xi1>, vector<16x128xi32>
    %cst_14 = arith.constant dense<2147483647> : vector<16xi32>
    %21 = vector.multi_reduction <minsi>, %20, %cst_14 [1] : vector<16x128xi32> to vector<16xi32>
    %22 = vector.shape_cast %21 : vector<16xi32> to vector<16x1xi32>
    %c0_15 = arith.constant 0 : index
    %c0_16 = arith.constant 0 : index
    %23 = vector.load %arg4[%c0_15, %c0_16] : memref<16x1xi32, #tpu.memory_space<vmem>>, vector<16x1xi32>
    %24 = arith.muli %23, %22 : vector<16x1xi32>
    %c0_17 = arith.constant 0 : index
    %c0_18 = arith.constant 0 : index
    %25 = vector.load %arg5[%c0_17, %c0_18] : memref<16x1xi32, #tpu.memory_space<vmem>>, vector<16x1xi32>
    tpu.vector_store %arg5[%c0_17, %c0_18], %24 {strides = array<i32>} : memref<16x1xi32, #tpu.memory_space<vmem>>, vector<16x1xi32>,
    return
  }
  func.func @transform_0(%arg0: i32) -> (i32, i32, i32) {
    %c0_i32 = arith.constant 0 : i32
    %c0_i32_0 = arith.constant 0 : i32
    %c0_i32_1 = arith.constant 0 : i32
    return %c0_i32, %arg0, %c0_i32_0 : i32, i32, i32
  }
  func.func @transform_1(%arg0: i32) -> (i32, i32, i32) {
    %c0_i32 = arith.constant 0 : i32
    %c0_i32_0 = arith.constant 0 : i32
    %c0_i32_1 = arith.constant 0 : i32
    %c0_i32_2 = arith.constant 0 : i32
    return %c0_i32, %c0_i32_0, %c0_i32_1 : i32, i32, i32
  }
  func.func @transform_2(%arg0: i32) -> (i32, i32) {
    %c0_i32 = arith.constant 0 : i32
    %c0_i32_0 = arith.constant 0 : i32
    %c0_i32_1 = arith.constant 0 : i32
    return %c0_i32, %c0_i32_0 : i32, i32
  }
  func.func @transform_3(%arg0: i32) -> (i32, i32) {
    %c0_i32 = arith.constant 0 : i32
    %c0_i32_0 = arith.constant 0 : i32
    return %arg0, %c0_i32 : i32, i32
  }
  func.func @transform_4(%arg0: i32) -> (i32, i32) {
    %c0_i32 = arith.constant 0 : i32
    %c0_i32_0 = arith.constant 0 : i32
    return %arg0, %c0_i32 : i32, i32
  }
}

</mosaic_0001>

<llo_original>
// kernel: forward.2
$region0: #{forward.2}
  #allocation0 [shape = 'u32[]', space=smem, size = 0x4, offset = 0x4, fixed_abs, tag = 'smem constant byte address 0x4 - core index']
  #allocation1 [shape = 'u32[72,128]{1,0:T(1,128)}', space=vmem, size = 0x9000, scoped, tag = 'internal scratch']
  #allocation2 [shape = 'f32[2,32]{1,0:T(2,128)}', space=vmem, size = 0x400, scoped, tag = 'scratch operand']
  #allocation3 [shape = 'f32[2,32]{1,0:T(2,128)}', space=vmem, size = 0x400, scoped, tag = 'scratch operand']
  #allocation4 [shape = 'f32[16,128]{1,0:T(8,128)}', space=vmem, size = 0x2000, scoped, tag = 'scratch operand']
  %s0 = inlined_call_operand.vmem [shape: bf16[16,32], index: 0, kind: input, shape index: {}]
  %s1 = inlined_call_operand.vmem [shape: bf16[2,32,128], index: 1, kind: input, shape index: {}]
  %s2 = inlined_call_operand.vmem [shape: bf16[2,32,128], index: 2, kind: input, shape index: {}]
  %s3 = inlined_call_operand.vmem [shape: f32[2,1,128], index: 3, kind: input, shape index: {}]
  %s4 = inlined_call_operand.vmem [shape: f32[2,16,32], index: 4, kind: output, shape index: {}]
  %s5 = sld [smem:[#allocation0]]
  $region60: #{forward.2} parent=0
    _
  %s7 = ssub.s32 1, %s5
  %s8 = scalar_select 0, %s7, %s5
  loop: start=0, step=1, limit=4
  $region2: #{forward.2} parent=0 // loop_pre_header
    _
  $region3: #{forward.2} parent=0 // loop_header
    %s10 = sphi 0, %s14
    %p11 = scmp.ge.s32.totalorder %s10, 4
    %s17 = sphi 0, %s29
    %s18 = sphi 0, %s25
    %s19 = sphi 0, %s17
    %s20 = sphi 0, %s18
    %s21 = sphi 0, %s19
    %s22 = sphi 0, %s20
    %s42 = sphi 0, %s44
    %s45 = sphi 0, %s42
    %s46 = sphi 0, %s45
    %s62 = sphi 0, %s46
    %s68 = sphi 0, %s70
    %s71 = sphi 0, %s68
    %s72 = sphi 0, %s71
    %s88 = sphi 0, %s72
    %s94 = sphi 0, %s96
    %s97 = sphi 0, %s94
    %s98 = sphi 0, %s97
    %s114 = sphi 0, %s98
    %s120 = sphi 0, %s122
    %s123 = sphi 0, %s120
    %s124 = sphi 0, %s123
    %s140 = sphi 0, %s124
    %s158 = sphi 0, %s160
    %s161 = sphi 0, %s158
    %s162 = sphi 0, %s161
    %s178 = sphi 0, %s162
  $region4: #{forward.2} parent=0 // loop_header_branch
    %13 = sbr.rel (%p11) target = $region8
  $region5: #{forward.2} parent=0 // loop_body
    %s15 = ssub.s32 %s10, 1
    %s16 = ssub.s32 %s10, 2
    %s23 = sadd.s32 1, %s18
    %p24 = scmp.ge.s32.totalorder %s23, 1
    %s25 = scalar_select %p24, 0, %s23
    %s26 = sadd.s32 1, %s17
    %s27 = scalar_select %p24, %s26, %s17
    %p28 = scmp.ge.s32.totalorder %s27, 2
    %s29 = scalar_select %p28, 0, %s27
    %s30 = ssub.s32 1, %s17
    %s31 = smul.u32 %s18, %s30
    %s32 = ssub.s32 0, %s18
    %s33 = smul.u32 %s32, %s17
    %s34 = sadd.s32 %s31, %s33
    %s35 = ssub.s32 1, %s29
    %s36 = smul.u32 %s25, %s35
    %s37 = ssub.s32 0, %s25
    %s38 = smul.u32 %s37, %s29
    %s39 = sadd.s32 %s36, %s38
    %s40 = ssub.s32 %s34, %s39
    %p41 = scmp.eq.s32.totalorder %s40, 0
    %s43 = sadd.s32 %s42, 1
    %s44 = scalar_select %p41, %s42, %s43
    %p47 = pneg %p41
    %p48 = scmp.eq.s32.totalorder %s10, 1
    %p49 = por %p47, %p48
    %p50 = scmp.ne.s32.totalorder %s42, %s45
    %p51 = scmp.eq.s32.totalorder %s10, 0
    %p52 = por %p50, %p51
    %p53 = scmp.ne.s32.totalorder %s42, %s45
    %p54 = scmp.eq.s32.totalorder %s15, 1
    %p55 = por %p53, %p54
    %p56 = scmp.ne.s32.totalorder %s45, %s46
    %p57 = scmp.eq.s32.totalorder %s15, 0
    %p58 = por %p56, %p57
    %p59 = scmp.ne.s32.totalorder %s45, %s46
    %p60 = scmp.eq.s32.totalorder %s16, 1
    %p61 = por %p59, %p60
    %p63 = scmp.ne.s32.totalorder %s46, %s62
    %p64 = scmp.eq.s32.totalorder %s16, 0
    %p65 = por %p63, %p64
    %s66 = ssub.s32 %s17, %s29
    %p67 = scmp.eq.s32.totalorder %s66, 0
    %s69 = sadd.s32 %s68, 1
    %s70 = scalar_select %p67, %s68, %s69
    %p73 = pneg %p67
    %p74 = scmp.eq.s32.totalorder %s10, 1
    %p75 = por %p73, %p74
    %p76 = scmp.ne.s32.totalorder %s68, %s71
    %p77 = scmp.eq.s32.totalorder %s10, 0
    %p78 = por %p76, %p77
    %p79 = scmp.ne.s32.totalorder %s68, %s71
    %p80 = scmp.eq.s32.totalorder %s15, 1
    %p81 = por %p79, %p80
    %p82 = scmp.ne.s32.totalorder %s71, %s72
    %p83 = scmp.eq.s32.totalorder %s15, 0
    %p84 = por %p82, %p83
    %p85 = scmp.ne.s32.totalorder %s71, %s72
    %p86 = scmp.eq.s32.totalorder %s16, 1
    %p87 = por %p85, %p86
    %p89 = scmp.ne.s32.totalorder %s72, %s88
    %p90 = scmp.eq.s32.totalorder %s16, 0
    %p91 = por %p89, %p90
    %s92 = ssub.s32 %s17, %s29
    %p93 = scmp.eq.s32.totalorder %s92, 0
    %s95 = sadd.s32 %s94, 1
    %s96 = scalar_select %p93, %s94, %s95
    %p99 = pneg %p93
    %p100 = scmp.eq.s32.totalorder %s10, 1
    %p101 = por %p99, %p100
    %p102 = scmp.ne.s32.totalorder %s94, %s97
    %p103 = scmp.eq.s32.totalorder %s10, 0
    %p104 = por %p102, %p103
    %p105 = scmp.ne.s32.totalorder %s94, %s97
    %p106 = scmp.eq.s32.totalorder %s15, 1
    %p107 = por %p105, %p106
    %p108 = scmp.ne.s32.totalorder %s97, %s98
    %p109 = scmp.eq.s32.totalorder %s15, 0
    %p110 = por %p108, %p109
    %p111 = scmp.ne.s32.totalorder %s97, %s98
    %p112 = scmp.eq.s32.totalorder %s16, 1
    %p113 = por %p111, %p112
    %p115 = scmp.ne.s32.totalorder %s98, %s114
    %p116 = scmp.eq.s32.totalorder %s16, 0
    %p117 = por %p115, %p116
    %s118 = ssub.s32 %s17, %s29
    %p119 = scmp.eq.s32.totalorder %s118, 0
    %s121 = sadd.s32 %s120, 1
    %s122 = scalar_select %p119, %s120, %s121
    %p125 = pneg %p119
    %p126 = scmp.eq.s32.totalorder %s10, 1
    %p127 = por %p125, %p126
    %p128 = scmp.ne.s32.totalorder %s120, %s123
    %p129 = scmp.eq.s32.totalorder %s10, 0
    %p130 = por %p128, %p129
    %p131 = scmp.ne.s32.totalorder %s120, %s123
    %p132 = scmp.eq.s32.totalorder %s15, 1
    %p133 = por %p131, %p132
    %p134 = scmp.ne.s32.totalorder %s123, %s124
    %p135 = scmp.eq.s32.totalorder %s15, 0
    %p136 = por %p134, %p135
    %p137 = scmp.ne.s32.totalorder %s123, %s124
    %p138 = scmp.eq.s32.totalorder %s16, 1
    %p139 = por %p137, %p138
    %p141 = scmp.ne.s32.totalorder %s124, %s140
    %p142 = scmp.eq.s32.totalorder %s16, 0
    %p143 = por %p141, %p142
    %s144 = ssub.s32 1, %s17
    %s145 = smul.u32 %s18, %s144
    %s146 = ssub.s32 0, %s18
    %s147 = smul.u32 %s146, %s17
    %s148 = sadd.s32 %s145, %s147
    %s149 = ssub.s32 1, %s29
    %s150 = smul.u32 %s25, %s149
    %s151 = ssub.s32 0, %s25
    %s152 = smul.u32 %s151, %s29
    %s153 = sadd.s32 %s150, %s152
    %s154 = ssub.s32 %s17, %s29
    %s155 = ssub.s32 %s148, %s153
    %s156 = sor.u32 %s154, %s155
    %p157 = scmp.eq.s32.totalorder %s156, 0
    %s159 = sadd.s32 %s158, 1
    %s160 = scalar_select %p157, %s158, %s159
    %p163 = pneg %p157
    %p164 = scmp.eq.s32.totalorder %s10, 1
    %p165 = por %p163, %p164
    %p166 = scmp.ne.s32.totalorder %s158, %s161
    %p167 = scmp.eq.s32.totalorder %s10, 0
    %p168 = por %p166, %p167
    %p169 = scmp.ne.s32.totalorder %s158, %s161
    %p170 = scmp.eq.s32.totalorder %s15, 1
    %p171 = por %p169, %p170
    %p172 = scmp.ne.s32.totalorder %s161, %s162
    %p173 = scmp.eq.s32.totalorder %s15, 0
    %p174 = por %p172, %p173
    %p175 = scmp.ne.s32.totalorder %s161, %s162
    %p176 = scmp.eq.s32.totalorder %s16, 1
    %p177 = por %p175, %p176
    %p179 = scmp.ne.s32.totalorder %s162, %s178
    %p180 = scmp.eq.s32.totalorder %s16, 0
    %p181 = por %p179, %p180
    %p182 = scmp.le.s32.totalorder 1, %s10
    %p183 = scmp.lt.s32.totalorder %s10, 3
    %p184 = pnand %p182, %p183
    %p185 = pneg %p184
    // Predicated region
    $region9: #{forward.2} parent=5 // pred_check
      _
    $region10: #{forward.2} parent=5 // pred_check_branch
      %187 = sbr.rel (%p184) target = $region12
    $region11: #{forward.2} parent=5 // pred_region
      %s188 = ssub.s32 %s10, 1
    $region12: #{forward.2} parent=5 // pred_fallthru
      _
    %p189 = scmp.lt.s32.totalorder %s10, 2
    // Predicated region
    $region13: #{forward.2} parent=5 // pred_check
      %p190 = pneg %p189
    $region14: #{forward.2} parent=5 // pred_check_branch
      %192 = sbr.rel (%p190) target = $region16
    $region15: #{forward.2} parent=5 // pred_region
      // Predicated region
      $region17: #{forward.2} parent=15 // pred_check
        %p193 = pneg %p52
      $region18: #{forward.2} parent=15 // pred_check_branch
        %195 = sbr.rel (%p193) target = $region20
      $region19: #{forward.2} parent=15 // pred_region
        %s196 = ssub.s32 1, %s17
        %s197 = smul.u32 %s18, %s196
        %s198 = ssub.s32 0, %s18
        %s199 = smul.u32 %s198, %s17
        %s200 = sadd.s32 %s197, %s199
        %s201 = smul.u32 2, %s200
        %p202 = scmp.lt.s32.totalorder %s201, 1
        %s203 = scalar_select %p202, %s201, 1
        %s204 = smul.addr %s203, 4
        %s205 = scalar_lea.vmem %s0, %s204
        %s206 = ssub.s32 1, %s17
        %s207 = smul.u32 %s18, %s206
        %s208 = ssub.s32 0, %s18
        %s209 = smul.u32 %s208, %s17
        %s210 = sadd.s32 %s207, %s209
        %s211 = smul.u32 2, %s210
      $region20: #{forward.2} parent=15 // pred_fallthru
        _
      // Predicated region
      $region21: #{forward.2} parent=15 // pred_check
        %p212 = pneg %p78
      $region22: #{forward.2} parent=15 // pred_check_branch
        %214 = sbr.rel (%p212) target = $region24
      $region23: #{forward.2} parent=15 // pred_region
        %p215 = scmp.lt.s32.totalorder %s17, 1
        %s216 = scalar_select %p215, %s17, 1
        %s217 = smul.addr %s216, 4
        %s218 = smul.addr %s217, 4
        %s219 = scalar_lea.vmem %s1, %s218
      $region24: #{forward.2} parent=15 // pred_fallthru
        _
      // Predicated region
      $region25: #{forward.2} parent=15 // pred_check
        %p220 = pneg %p104
      $region26: #{forward.2} parent=15 // pred_check_branch
        %222 = sbr.rel (%p220) target = $region28
      $region27: #{forward.2} parent=15 // pred_region
        %p223 = scmp.lt.s32.totalorder %s17, 1
        %s224 = scalar_select %p223, %s17, 1
        %s225 = smul.addr %s224, 4
        %s226 = smul.addr %s225, 4
        %s227 = scalar_lea.vmem %s2, %s226
      $region28: #{forward.2} parent=15 // pred_fallthru
        _
      // Predicated region
      $region29: #{forward.2} parent=15 // pred_check
        %p228 = pneg %p130
      $region30: #{forward.2} parent=15 // pred_check_branch
        %230 = sbr.rel (%p228) target = $region32
      $region31: #{forward.2} parent=15 // pred_region
        %p231 = scmp.lt.s32.totalorder %s17, 1
        %s232 = scalar_select %p231, %s17, 1
        %s233 = scalar_lea.vmem %s3, %s232
      $region32: #{forward.2} parent=15 // pred_fallthru
        _
    $region16: #{forward.2} parent=5 // pred_fallthru
      _
    %p234 = scmp.le.s32.totalorder 1, %s10
    %p235 = scmp.lt.s32.totalorder %s10, 3
    %p236 = pnand %p234, %p235
    %p237 = pneg %p236
    // Predicated region
    $region33: #{forward.2} parent=5 // pred_check
      _
    $region34: #{forward.2} parent=5 // pred_check_branch
      %239 = sbr.rel (%p236) target = $region36
    $region35: #{forward.2} parent=5 // pred_region
      %s240 = ssub.s32 %s10, 1
      %s241 = ssub.s32 1, %s19
      %s242 = smul.u32 %s20, %s241
      %s243 = ssub.s32 0, %s20
      %s244 = smul.u32 %s243, %s19
      %s245 = sadd.s32 %s242, %s244
      %s246 = smul.u32 2, %s245
      %p247 = scmp.lt.s32.totalorder %s246, 1
      %s248 = scalar_select %p247, %s246, 1
      %s249 = smul.addr %s248, 4
      %s250 = scalar_lea.vmem %s0, %s249
      %p251 = pneg %p58
      %p252 = pneg %p55
      %p253 = scmp.lt.s32.totalorder %s19, 1
      %s254 = scalar_select %p253, %s19, 1
      %s255 = smul.addr %s254, 4
      %s256 = smul.addr %s255, 4
      %s257 = scalar_lea.vmem %s1, %s256
      %p258 = pneg %p84
      %p259 = pneg %p81
      %p260 = scmp.lt.s32.totalorder %s19, 1
      %s261 = scalar_select %p260, %s19, 1
      %s262 = smul.addr %s261, 4
      %s263 = smul.addr %s262, 4
      %s264 = scalar_lea.vmem %s2, %s263
      %p265 = pneg %p110
      %p266 = pneg %p107
      %p267 = scmp.lt.s32.totalorder %s19, 1
      %s268 = scalar_select %p267, %s19, 1
      %s269 = scalar_lea.vmem %s3, %s268
      %p270 = pneg %p136
      %p271 = pneg %p133
      %p272 = pneg %p174
      %p273 = pneg %p171
      %s274 = ssub.s32 1, %s19
      %s275 = smul.u32 %s20, %s274
      %s276 = ssub.s32 0, %s20
      %s277 = smul.u32 %s276, %s19
      %s278 = sadd.s32 %s275, %s277
      %s279 = smul.u32 2, %s278
      %p280 = scmp.lt.s32.totalorder %s19, 1
      %s281 = scalar_select %p280, %s19, 1
      %p282 = scmp.lt.s32.totalorder %s279, 1
      %s283 = scalar_select %p282, %s279, 1
      %s284 = smul.addr %s281, 2
      %s285 = sadd.s32 %s283, %s284
      %s286 = smul.addr %s285, 8
      %s287 = scalar_lea.vmem %s4, %s286
      %s288 = ssub.s32 1, %s19
      %s289 = smul.u32 %s20, %s288
      %s290 = ssub.s32 0, %s20
      %s291 = smul.u32 %s290, %s19
      %s292 = sadd.s32 %s289, %s291
      %s293 = smul.u32 2, %s292
      %p294 = scmp.lt.s32.totalorder %s293, 1
      %s295 = scalar_select %p294, %s293, 1
      %s296 = smul.addr %s295, 4
      %s297 = scalar_lea.vmem %s0, %s296
      %s298 = ssub.s32 1, %s19
      %s299 = smul.u32 %s20, %s298
      %s300 = ssub.s32 0, %s20
      %s301 = smul.u32 %s300, %s19
      %s302 = sadd.s32 %s299, %s301
      %s303 = smul.u32 2, %s302
      %p304 = scmp.lt.s32.totalorder %s19, 1
      %s305 = scalar_select %p304, %s19, 1
      %s306 = smul.addr %s305, 4
      %s307 = smul.addr %s306, 4
      %s308 = scalar_lea.vmem %s1, %s307
      %p309 = scmp.lt.s32.totalorder %s19, 1
      %s310 = scalar_select %p309, %s19, 1
      %s311 = smul.addr %s310, 4
      %s312 = smul.addr %s311, 4
      %s313 = scalar_lea.vmem %s2, %s312
      %p314 = scmp.lt.s32.totalorder %s19, 1
      %s315 = scalar_select %p314, %s19, 1
      %s316 = scalar_lea.vmem %s3, %s315
      %s317 = ssub.s32 1, %s19
      %s318 = smul.u32 %s20, %s317
      %s319 = ssub.s32 0, %s20
      %s320 = smul.u32 %s319, %s19
      %s321 = sadd.s32 %s318, %s320
      %s322 = smul.u32 2, %s321
      %p323 = scmp.lt.s32.totalorder %s19, 1
      %s324 = scalar_select %p323, %s19, 1
      %p325 = scmp.lt.s32.totalorder %s322, 1
      %s326 = scalar_select %p325, %s322, 1
      %s327 = smul.addr %s324, 2
      %s328 = sadd.s32 %s326, %s327
      %s329 = smul.addr %s328, 8
      %s330 = scalar_lea.vmem %s4, %s329
      %s331 = ssub.s32 1, %s19
      %s332 = smul.u32 %s20, %s331
      %s333 = ssub.s32 0, %s20
      %s334 = smul.u32 %s333, %s19
      %s335 = sadd.s32 %s332, %s334
      %s336 = smul.u32 2, %s335
      %p338 = scmp.eq.s32.totalorder %s20, 0
      // Predicated region
      $region37: #{forward.2} parent=35 // pred_check
        %p339 = pneg %p338
      $region38: #{forward.2} parent=35 // pred_check_branch
        %341 = sbr.rel (%p339) target = $region40
      $region39: #{forward.2} parent=35 // pred_region
        %vm342 = vcmask 254976
        %343 = vst.msk [vmem:[#allocation2] sm:$0x3] %vm342, 0.0
        %344 = vst.msk [vmem:[#allocation3] sm:$0x3] %vm342, 0.0
      $region40: #{forward.2} parent=35 // pred_fallthru
        _
      %v345 = vld [vmem:[%s297] sm:$0xf]
      %v346 = vld [vmem:[%s297 + $0x4] sm:$0xf]
      %v347 = vld [vmem:[%s308] sm:$0xf]
      %v348 = vld [vmem:[%s308 + $0x4] sm:$0xf]
      %v349 = vld [vmem:[%s308 + $0x8] sm:$0xf]
      %v350 = vld [vmem:[%s308 + $0xc] sm:$0xf]
      %v351 = vld [vmem:[%s316] sm:$0x1]
      %v353 = vperm.slane %v351, 0
      %v357 = vunpack.c.l.b16 %v345
      %v358 = vunpack.c.l.b16 %v346
      %v359 = vpack.c.b16 %v358, %v357
      %v364 = vunpack.c.l.b16 %v347
      %v365 = vunpack.c.l.b16 %v348
      %v366 = vunpack.c.l.b16 %v349
      %v367 = vunpack.c.l.b16 %v350
      %v368 = vpack.c.b16 %v365, %v364
      %v369 = vpack.c.b16 %v367, %v366
      %vm372 = vcmask 261120
      %v374 = vsel %vm372, %v359, 0
      %376 = vmatpush.bf16.msra.mxu0 0
      %377 = vmatpush.bf16.msra.mxu0 0
      %378 = vmatpush.bf16.msra.mxu0 0
      %379 = vmatpush.bf16.msra.mxu0 0
      %380 = vmatpush.bf16.msra.mxu0 0
      %381 = vmatpush.bf16.msra.mxu0 0
      %382 = vmatpush.bf16.msra.mxu0 %v369
      %383 = vmatpush.bf16.msra.mxu0 %v368
      %384 = vmatmul.bf16.gmra.mxu0 %v374
      %v385 = vpop.f32.mrf.mxu0
      %v386 = vadd.f32 %v353, %v385
      %v387 = vpop.f32.mrf.mxu0
      %v388 = vadd.f32 %v353, %v387
      %389 = vdwg.mxu0
      %390 = vst [vmem:[#allocation4] sm:$0xff] %v386
      %391 = vst [vmem:[#allocation4 + $0x8] sm:$0xff] %v388
      %v392 = vld [vmem:[%s313] sm:$0xf]
      %v393 = vld [vmem:[%s313 + $0x4] sm:$0xf]
      %v394 = vld [vmem:[%s313 + $0x8] sm:$0xf]
      %v395 = vld [vmem:[%s313 + $0xc] sm:$0xf]
      %v396 = vld [vmem:[#allocation2] sm:$0x3]
      %v397 = vld [vmem:[#allocation3] sm:$0x3]
      loop: start=0, step=1, limit=8
      $region41: #{forward.2} parent=35 // loop_pre_header
        _
      $region42: #{forward.2} parent=35 // loop_header
        %s399 = sphi 0, %s403
        %p400 = scmp.ge.s32.totalorder %s399, 8
        %v404 = vphi %v396, %v485
        %v405 = vphi %v397, %v492
      $region43: #{forward.2} parent=35 // loop_header_branch
        %402 = sbr.rel (%p400) target = $region47
      $region44: #{forward.2} parent=35 // loop_body
        %p406 = scmp.eq.s32.totalorder %s19, 0
        %s407 = ssub.s32 7, %s399
        %s408 = scalar_select %p406, %s399, %s407
        %s409 = smul.u32 %s408, 2
        %s410 = scalar_lea.vmem [#allocation4], %s409
        %v411 = vld [vmem:[%s410] sm:$0x3]
        %v412 = vpack.c.bf16 %v404, %v404
        %v417 = vunpack.c.l.b16 %v392
        %v418 = vunpack.c.l.b16 %v393
        %v419 = vunpack.c.l.b16 %v394
        %v420 = vunpack.c.l.b16 %v395
        %v421 = vpack.c.b16 %v418, %v417
        %v422 = vpack.c.b16 %v420, %v419
        %v426 = vsel %vm372, %v412, 0
        %428 = vmatpush.bf16.msra.mxu0 0
        %429 = vmatpush.bf16.msra.mxu0 0
        %430 = vmatpush.bf16.msra.mxu0 0
        %431 = vmatpush.bf16.msra.mxu0 0
        %432 = vmatpush.bf16.msra.mxu0 0
        %433 = vmatpush.bf16.msra.mxu0 0
        %434 = vmatpush.bf16.msra.mxu0 %v422
        %435 = vmatpush.bf16.msra.mxu0 %v421
        %436 = vmatmul.bf16.gmra.mxu0 %v426
        %v437 = vpop.f32.mrf.mxu0
        %v438 = vadd.f32 0.0, %v437
        %v439 = vpop.f32.mrf.mxu0
        %440 = vdwg.mxu0
        %v441 = vadd.f32 %v411, %v438
        %v442 = vxor.u32 %v441, 2147483648
        %v443 = vmul.f32 %v442, 1.442695
        %v444 = vpow.pop %v443
        %v445 = vadd.f32 %v444, 1.0
        %v446 = vrcp.pop %v445
        %v447 = vmul.f32 %v445, %v446
        %v448 = vsub.f32 1.0, %v447
        %v449 = vmul.f32 %v446, %v448
        %v450 = vadd.f32 %v446, %v449
        %vm451 = vweird.f32 %v445
        %vm452 = vweird.f32 %v446
        %vm453 = vmor %vm451, %vm452
        %v454 = vsel %vm453, %v446, %v450
        %v455 = vand.u32 2147483647, %v445
        %vm456 = vcmp.eq.f32.partialorder %v455, 8.507059e+37
        %v457 = vand.u32 %v445, 2147483648
        %v458 = vor.u32 1.1754944e-38, %v457
        %v459 = vsel %vm456, %v458, %v454
        %v460 = vmul.f32 1.0, %v459
        %v461 = vtanh.pop %v441
        %463 = vrot.lane.b32.xlu0 %v405, 32
        %v464 = vpop.permute.xlu0 %463
        %v466 = vmul.f32 %v460, %v464
        %468 = vrot.lane.b32.xlu0 %v461, 64
        %v469 = vpop.permute.xlu0 %468
        %v471 = vmul.f32 %v460, %v469
        %473 = vrot.lane.b32.xlu0 %v471, 32
        %v474 = vpop.permute.xlu0 %473
        %v476 = vadd.f32 %v466, %v474
        %v477 = vtanh.pop %v476
        %479 = vrot.lane.b32.xlu0 %v477, 64
        %v480 = vpop.permute.xlu0 %479
        %v482 = vmul.f32 %v460, %v480
        %484 = vrot.lane.b32.xlu0 %v482, 32
        %v485 = vpop.permute.xlu0 %484
        %s487 = scalar_lea.vmem %s330, %s409
        %vm488 = vcmask 254976
        %489 = vst.msk [vmem:[%s487] sm:$0x3] %vm488, %v485
        %491 = vrot.lane.b32.xlu0 %v476, 96
        %v492 = vpop.permute.xlu0 %491
      $region45: #{forward.2} parent=35 // loop_footer
        %s403 = sadd.s32 1, %s399
      $region46: #{forward.2} parent=35 // loop_footer_branch
        %398 = sbr.rel target = $region42
      $region47: #{forward.2} parent=35 // loop_exit
        _
      %vm494 = vcmask 254976
      %495 = vst.msk [vmem:[#allocation2] sm:$0x3] %vm494, %v404
      %496 = vst.msk [vmem:[#allocation3] sm:$0x3] %vm494, %v405
      %s497 = ssub.s32 1, %s19
      %s498 = smul.u32 %s20, %s497
      %s499 = ssub.s32 0, %s20
      %s500 = smul.u32 %s499, %s19
      %s501 = sadd.s32 %s498, %s500
      %s502 = smul.u32 2, %s501
      %p503 = scmp.lt.s32.totalorder %s19, 1
      %s504 = scalar_select %p503, %s19, 1
      %p505 = scmp.lt.s32.totalorder %s502, 1
      %s506 = scalar_select %p505, %s502, 1
      %s507 = smul.addr %s504, 2
      %s508 = sadd.s32 %s506, %s507
      %s509 = smul.addr %s508, 8
      %s510 = scalar_lea.vmem %s4, %s509
      // Predicated region
      $region48: #{forward.2} parent=35 // pred_check
        %p511 = pneg %p171
      $region49: #{forward.2} parent=35 // pred_check_branch
        %513 = sbr.rel (%p511) target = $region51
      $region50: #{forward.2} parent=35 // pred_region
        %s514 = ssub.s32 1, %s19
        %s515 = smul.u32 %s20, %s514
        %s516 = ssub.s32 0, %s20
        %s517 = smul.u32 %s516, %s19
        %s518 = sadd.s32 %s515, %s517
        %s519 = smul.u32 2, %s518
      $region51: #{forward.2} parent=35 // pred_fallthru
        _
    $region36: #{forward.2} parent=5 // pred_fallthru
      _
    %p520 = scmp.le.s32.totalorder 2, %s10
    // Predicated region
    $region52: #{forward.2} parent=5 // pred_check
      %p521 = pneg %p520
    $region53: #{forward.2} parent=5 // pred_check_branch
      %523 = sbr.rel (%p521) target = $region55
    $region54: #{forward.2} parent=5 // pred_region
      %s524 = ssub.s32 %s10, 2
      // Predicated region
      $region56: #{forward.2} parent=54 // pred_check
        %p525 = pneg %p177
      $region57: #{forward.2} parent=54 // pred_check_branch
        %527 = sbr.rel (%p525) target = $region59
      $region58: #{forward.2} parent=54 // pred_region
        %s528 = ssub.s32 1, %s21
        %s529 = smul.u32 %s22, %s528
        %s530 = ssub.s32 0, %s22
        %s531 = smul.u32 %s530, %s21
        %s532 = sadd.s32 %s529, %s531
        %s533 = smul.u32 2, %s532
        %p534 = scmp.lt.s32.totalorder %s21, 1
        %s535 = scalar_select %p534, %s21, 1
        %p536 = scmp.lt.s32.totalorder %s533, 1
        %s537 = scalar_select %p536, %s533, 1
        %s538 = smul.addr %s535, 2
        %s539 = sadd.s32 %s537, %s538
        %s540 = smul.addr %s539, 8
        %s541 = scalar_lea.vmem %s4, %s540
      $region59: #{forward.2} parent=54 // pred_fallthru
        _
    $region55: #{forward.2} parent=5 // pred_fallthru
      _
  $region6: #{forward.2} parent=0 // loop_footer
    %s14 = sadd.s32 1, %s10
  $region7: #{forward.2} parent=0 // loop_footer_branch
    %9 = sbr.rel target = $region3
  $region8: #{forward.2} parent=0 // loop_exit
    _

// kernel: forward.3
$region0: #{forward.3}
  #allocation0 [shape = 'u32[]', space=smem, size = 0x4, offset = 0x4, fixed_abs, tag = 'smem constant byte address 0x4 - core index']
  #allocation1 [shape = 'u32[72,128]{1,0:T(1,128)}', space=vmem, size = 0x9000, scoped, tag = 'internal scratch']
  %s0 = inlined_call_operand.vmem [shape: f32[2,16,32], index: 0, kind: input, shape index: {}]
  %s1 = inlined_call_operand.vmem [shape: f32[2,32,128], index: 1, kind: input, shape index: {}]
  %s2 = inlined_call_operand.vmem [shape: f32[1,128], index: 2, kind: input, shape index: {}]
  %s3 = inlined_call_operand.vmem [shape: s32[16,1], index: 3, kind: input, shape index: {}]
  %s4 = inlined_call_operand.vmem [shape: s32[16,1], index: 4, kind: output, shape index: {}]
  %s5 = sld [smem:[#allocation0]]
  $region26: #{forward.3} parent=0
    _
  %s7 = ssub.s32 1, %s5
  %s8 = scalar_select 0, %s7, %s5
  // Predicated region
  $region2: #{forward.3} parent=0 // pred_check
    _
  $region3: #{forward.3} parent=0 // pred_check_branch
    %10 = sbr.rel (0) target = $region5
  $region4: #{forward.3} parent=0 // pred_region
    _
  $region5: #{forward.3} parent=0 // pred_fallthru
    _
  // Predicated region
  $region6: #{forward.3} parent=0 // pred_check
    _
  $region7: #{forward.3} parent=0 // pred_check_branch
    %12 = sbr.rel (0) target = $region9
  $region8: #{forward.3} parent=0 // pred_region
    _
  $region9: #{forward.3} parent=0 // pred_fallthru
    _
  // Predicated region
  $region10: #{forward.3} parent=0 // pred_check
    _
  $region11: #{forward.3} parent=0 // pred_check_branch
    %14 = sbr.rel (0) target = $region13
  $region12: #{forward.3} parent=0 // pred_region
    _
  $region13: #{forward.3} parent=0 // pred_fallthru
    _
  // Predicated region
  $region14: #{forward.3} parent=0 // pred_check
    _
  $region15: #{forward.3} parent=0 // pred_check_branch
    %16 = sbr.rel (0) target = $region17
  $region16: #{forward.3} parent=0 // pred_region
    _
  $region17: #{forward.3} parent=0 // pred_fallthru
    _
  %v17 = vld [vmem:[%s0] sm:$0xff]
  %v18 = vld [vmem:[%s0 + $0x8] sm:$0xff]
  %v19 = vld [vmem:[%s1] sm:$0xff]
  %v20 = vld [vmem:[%s1 + $0x8] sm:$0xff]
  %v21 = vld [vmem:[%s1 + $0x10] sm:$0xff]
  %v22 = vld [vmem:[%s1 + $0x18] sm:$0xff]
  %s23 = scalar_lea.vmem %s0, 16
  %v24 = vld [vmem:[%s23] sm:$0xff]
  %v25 = vld [vmem:[%s23 + $0x8] sm:$0xff]
  %s26 = scalar_lea.vmem %s1, 32
  %v27 = vld [vmem:[%s26] sm:$0xff]
  %v28 = vld [vmem:[%s26 + $0x8] sm:$0xff]
  %v29 = vld [vmem:[%s26 + $0x10] sm:$0xff]
  %v30 = vld [vmem:[%s26 + $0x18] sm:$0xff]
  %vm31 = vcmask 261120
  %v33 = vsel %vm31, %v24, 0
  %v36 = vsel %vm31, %v25, 0
  %38 = vmatpush.msra.mxu0 0.0
  %39 = vmatpush.msra.mxu0 0.0
  %40 = vmatpush.msra.mxu0 0.0
  %41 = vmatpush.msra.mxu0 0.0
  %42 = vmatpush.msra.mxu0 0.0
  %43 = vmatpush.msra.mxu0 0.0
  %44 = vmatpush.msra.mxu0 0.0
  %45 = vmatpush.msra.mxu0 0.0
  %46 = vmatpush.msra.mxu0 0.0
  %47 = vmatpush.msra.mxu0 0.0
  %48 = vmatpush.msra.mxu0 0.0
  %49 = vmatpush.msra.mxu0 0.0
  %50 = vmatpush.msra.mxu0 %v30
  %51 = vmatpush.msra.mxu0 %v29
  %52 = vmatpush.msra.mxu0 %v28
  %53 = vmatpush.msra.mxu0 %v27
  %54 = vmatmul.f32.gmra.mxu0 %v33
  %v55 = vpop.f32.mrf.mxu0
  %v56 = vadd.f32 0.0, %v55
  %57 = vmatmul.f32.gmra.mxu0 %v36
  %v58 = vpop.f32.mrf.mxu0
  %v59 = vadd.f32 0.0, %v58
  %60 = vdwg.mxu0
  %v62 = vsel %vm31, %v17, 0
  %v65 = vsel %vm31, %v18, 0
  %67 = vmatpush.msra.mxu0 0.0
  %68 = vmatpush.msra.mxu0 0.0
  %69 = vmatpush.msra.mxu0 0.0
  %70 = vmatpush.msra.mxu0 0.0
  %71 = vmatpush.msra.mxu0 0.0
  %72 = vmatpush.msra.mxu0 0.0
  %73 = vmatpush.msra.mxu0 0.0
  %74 = vmatpush.msra.mxu0 0.0
  %75 = vmatpush.msra.mxu0 0.0
  %76 = vmatpush.msra.mxu0 0.0
  %77 = vmatpush.msra.mxu0 0.0
  %78 = vmatpush.msra.mxu0 0.0
  %79 = vmatpush.msra.mxu0 %v22
  %80 = vmatpush.msra.mxu0 %v21
  %81 = vmatpush.msra.mxu0 %v20
  %82 = vmatpush.msra.mxu0 %v19
  %83 = vmatmul.f32.gmra.mxu0 %v62
  %v84 = vpop.f32.mrf.mxu0
  %v85 = vadd.f32 %v56, %v84
  %86 = vmatmul.f32.gmra.mxu0 %v65
  %v87 = vpop.f32.mrf.mxu0
  %v88 = vadd.f32 %v59, %v87
  %89 = vdwg.mxu0
  %v90 = vld [vmem:[%s2] sm:$0x1]
  %v92 = vperm.slane %v90, 0
  %v94 = vadd.f32 %v85, %v92
  %v95 = vadd.f32 %v88, %v92
  %96 = vmax.xlane.f32.xlu0 %v94
  %v97 = vpop.xlane.xlu0 %96
  %98 = vmax.xlane.f32.xlu0 %v95
  %v99 = vpop.xlane.xlu0 %98
  %v100 = vlaneseq
  %v101 = vand.u32 %v100, 127
  %vm102 = vcmp.eq.f32.partialorder %v94, %v97
  %vm103 = vcmp.eq.f32.partialorder %v95, %v99
  %v104 = vsel %vm102, %v101, 128
  %v105 = vsel %vm103, %v101, 128
  %v106 = vand.u32 %v104, 65535
  %v107 = vshra.s32 %v104, 16
  %v108 = vcvt.s32.f32 %v106
  %v109 = vcvt.s32.f32 %v107
  %110 = vmin.xlane.f32.xlu0 %v109
  %v111 = vpop.xlane.xlu0 %110
  %vm112 = vcmp.eq.f32.partialorder %v109, %v111
  %v113 = vsel %vm112, %v108, inf
  %114 = vmin.xlane.f32.xlu0 %v113
  %v115 = vpop.xlane.xlu0 %114
  %v116 = vcvt.f32.s32 %v115
  %v117 = vcvt.f32.s32 %v111
  %v118 = vshll.u32 %v117, 16
  %v119 = vadd.s32 %v118, %v116
  %v120 = vand.u32 %v105, 65535
  %v121 = vshra.s32 %v105, 16
  %v122 = vcvt.s32.f32 %v120
  %v123 = vcvt.s32.f32 %v121
  %124 = vmin.xlane.f32.xlu0 %v123
  %v125 = vpop.xlane.xlu0 %124
  %vm126 = vcmp.eq.f32.partialorder %v123, %v125
  %v127 = vsel %vm126, %v122, inf
  %128 = vmin.xlane.f32.xlu0 %v127
  %v129 = vpop.xlane.xlu0 %128
  %v130 = vcvt.f32.s32 %v129
  %v131 = vcvt.f32.s32 %v125
  %v132 = vshll.u32 %v131, 16
  %v133 = vadd.s32 %v132, %v130
  %v134 = vld [vmem:[%s3] sm:$0xff]
  %v135 = vld [vmem:[%s3 + $0x8] sm:$0xff]
  %v136 = vmul.u32 %v134, %v119
  %v137 = vmul.u32 %v135, %v133
  %vm138 = vcmask 7168
  %139 = vst.msk [vmem:[%s4] sm:$0xff] %vm138, %v136
  %140 = vst.msk [vmem:[%s4 + $0x8] sm:$0xff] %vm138, %v137
  // Predicated region
  $region18: #{forward.3} parent=0 // pred_check
    _
  $region19: #{forward.3} parent=0 // pred_check_branch
    %142 = sbr.rel (0) target = $region21
  $region20: #{forward.3} parent=0 // pred_region
    _
  $region21: #{forward.3} parent=0 // pred_fallthru
    _
  // Predicated region
  $region22: #{forward.3} parent=0 // pred_check
    _
  $region23: #{forward.3} parent=0 // pred_check_branch
    %144 = sbr.rel (0) target = $region25
  $region24: #{forward.3} parent=0 // pred_region
    _
  $region25: #{forward.3} parent=0 // pred_fallthru
    _

</llo_original>
